<compile_context>
chip_gen: v5e
topology: v5e:2x2
jax: 0.10.0
libtpu: 0.0.40
codegen_flags: <defaults>
</compile_context>

<pallas_src>
import math
from functools import partial

import jax
import jax.numpy as jnp
from jax import lax
from jax.experimental import pallas as pl
from jax.experimental.pallas import tpu as pltpu

# Conservative scoped-VMEM budget: above the v5e/v6e defaults (16/32 MiB) but
# leaves headroom inside v7x's 64 MiB physical VMEM.
VMEM_LIMIT_BYTES = 48 * 1024 * 1024


# --------------------------- kernel 1: fused QKV ---------------------------- #

def qkv_proj_kernel(x_ref, w_ref, q_ref, k_ref, v_ref):
    """x(tm,E) @ Wqkv^T(E,3E) -> q/k/v(tm,E): bf16 MXU operands, f32 accumulate."""
    e = x_ref.shape[1]
    x_bf = x_ref[...].astype(jnp.bfloat16)           # cast in VMEM; x read from HBM once
    res = jnp.dot(x_bf, w_ref[...], preferred_element_type=jnp.float32)  # (tm, 3E) f32
    # Column splits at multiples of E are 128-lane aligned for production E.
    q_ref[...] = res[:, :e].astype(q_ref.dtype)
    k_ref[...] = res[:, e:2 * e].astype(k_ref.dtype)
    v_ref[...] = res[:, 2 * e:].astype(v_ref.dtype)


def _row_tile(m, target=512):
    # Pin the row tile near the HBM-roofline sweet spot and let pl.cdiv handle
    # the ragged last block (out-of-bounds rows are masked on store), instead
    # of falling back to tiny divisors or one giant block.
    return m if m <= target else target


def fused_qkv_projection(x2d, w_qkv_t):
    m, e = x2d.shape
    n = w_qkv_t.shape[1]
    tm = _row_tile(m)
    out_sd = jax.ShapeDtypeStruct((m, e), jnp.bfloat16)
    return pl.pallas_call(
        qkv_proj_kernel,
        out_shape=(out_sd, out_sd, out_sd),
        grid=(pl.cdiv(m, tm),),
        in_specs=[
            pl.BlockSpec((tm, e), lambda i: (i, 0)),
            # Resident fused weight (constant index_map -> DMA'd once).
            # TODO(synk): add pipeline_mode=pl.Buffered(1) and N(3E)/K grid axes for very large E.
            pl.BlockSpec((e, n), lambda i: (0, 0)),
        ],
        out_specs=(
            pl.BlockSpec((tm, e), lambda i: (i, 0)),
            pl.BlockSpec((tm, e), lambda i: (i, 0)),
            pl.BlockSpec((tm, e), lambda i: (i, 0)),
        ),
        compiler_params=pltpu.CompilerParams(
            dimension_semantics=("parallel",),
            vmem_limit_bytes=VMEM_LIMIT_BYTES),
    )(x2d, w_qkv_t)


# ------------- kernel 2: flash-style attention + unifyheads fused ----------- #

def attn_unify_kernel(q_ref, k_ref, v_ref, wu_ref, bu_ref, o_ref,
                      m_sc, l_sc, acc_sc, *, heads):
    # q_ref: (1, tq, E) bf16 ; k_ref/v_ref: (1, tk, E) bf16
    # wu_ref: (E, E) bf16 (resident) ; bu_ref: (1, E) f32 ; o_ref: (1, tq, E) f32
    # m_sc/l_sc: (H, tq, 1) f32 ; acc_sc: (H, tq, S) f32 (un-normalized p@v).
    ki = pl.program_id(2)
    e = q_ref.shape[2]
    s = e // heads

    @pl.when(ki == 0)
    def _init():
        m_sc[...] = jnp.full(m_sc.shape, -jnp.inf, jnp.float32)
        l_sc[...] = jnp.zeros(l_sc.shape, jnp.float32)
        acc_sc[...] = jnp.zeros(acc_sc.shape, jnp.float32)

    # TODO(synk): mask=True (causal) path not implemented.
    # TODO(synk): eliminate sub-128-lane head slices (head-pair packing / per-head-contiguous layout) and bound live ranges for very large H.
    for h in range(heads):
        lo = h * s
        qh = q_ref[0, :, lo:lo + s]          # (tq, S) bf16 (1/sqrt(E) folded into Wq)
        kh = k_ref[0, :, lo:lo + s]          # (tk, S) bf16
        vh = v_ref[0, :, lo:lo + s]          # (tk, S) bf16

        # scores = q @ k^T: contract the S axes, no materialized transpose.
        scores = lax.dot_general(qh, kh, (((1,), (1,)), ((), ())),
                                 preferred_element_type=jnp.float32)      # (tq, tk) f32

        m_prev = m_sc[h]                                                  # (tq, 1)
        m_new = jnp.maximum(m_prev, jnp.max(scores, axis=-1, keepdims=True))
        alpha = jnp.exp(m_prev - m_new)                                   # (tq, 1)
        p = jnp.exp(scores - m_new)                                       # (tq, tk) f32
        l_sc[h] = alpha * l_sc[h] + jnp.sum(p, axis=-1, keepdims=True)
        m_sc[h] = m_new
        # Deferred normalization: accumulate un-normalized p @ v (bf16 MXU),
        # scale by 1/l only once at finalize.
        acc_sc[h] = alpha * acc_sc[h] + jnp.dot(
            p.astype(jnp.bfloat16), vh, preferred_element_type=jnp.float32)

    @pl.when(ki == pl.num_programs(2) - 1)
    def _finalize():
        # Normalize each head, reassemble the (tq, E) activation, then ONE
        # consolidated unifyheads matmul with K=E (instead of H matmuls, K=S).
        head_cols = []
        for h in range(heads):
            inv_l = pl.reciprocal(l_sc[h], approx=True)                   # EUP slot
            head_cols.append((acc_sc[h] * inv_l).astype(jnp.bfloat16))
        unified = jnp.concatenate(head_cols, axis=-1)                     # (tq, E) bf16
        out = jnp.dot(unified, wu_ref[...], preferred_element_type=jnp.float32)
        o_ref[0] = (out + bu_ref[...]).astype(o_ref.dtype)


def _kv_tile(t, target=512):
    """Largest KV tile <= target that divides T (online softmax needs exact KV tiles)."""
    if t <= target:
        return t
    for cand in (512, 256, 128, 64, 32, 16, 8):
        if t % cand == 0:
            return cand
    return t  # no clean divisor: fall back to the full sequence


def attention_unify(q, k, v, wu_t, bu, heads):
    b, t, e = q.shape
    s = e // heads
    tq = t if t <= 256 else 256            # ragged last q-tile is masked on store
    tk = _kv_tile(t)
    grid = (b, pl.cdiv(t, tq), t // tk)
    kernel = partial(attn_unify_kernel, heads=heads)
    return pl.pallas_call(
        kernel,
        out_shape=jax.ShapeDtypeStruct((b, t, e), jnp.float32),
        grid=grid,
        in_specs=[
            pl.BlockSpec((1, tq, e), lambda bi, qi, ki: (bi, qi, 0)),
            pl.BlockSpec((1, tk, e), lambda bi, qi, ki: (bi, ki, 0)),
            pl.BlockSpec((1, tk, e), lambda bi, qi, ki: (bi, ki, 0)),
            pl.BlockSpec((e, e), lambda bi, qi, ki: (0, 0)),   # Wu^T resident
            pl.BlockSpec((1, e), lambda bi, qi, ki: (0, 0)),   # bias resident
        ],
        out_specs=pl.BlockSpec((1, tq, e), lambda bi, qi, ki: (bi, qi, 0)),
        scratch_shapes=[
            pltpu.VMEM((heads, tq, 1), jnp.float32),   # running max  m
            pltpu.VMEM((heads, tq, 1), jnp.float32),   # running sum  l
            pltpu.VMEM((heads, tq, s), jnp.float32),   # un-normalized per-head acc
        ],
        compiler_params=pltpu.CompilerParams(
            dimension_semantics=("parallel", "parallel", "arbitrary"),
            vmem_limit_bytes=VMEM_LIMIT_BYTES),
    )(q, k, v, wu_t, bu)


# ------------------------------ forward pass -------------------------------- #

def prepare_params(params):
    """One-time weight re-layout: transpose+concat, fold 1/sqrt(E) into Wq (in
    f32, before the cast), store matmul weights in bf16."""
    e = params["wq"].shape[0]
    inv_scale = 1.0 / math.sqrt(e)   # == E**-0.25 applied to both q and k in the ref
    w_qkv_t = jnp.concatenate(
        [params["wq"].T * inv_scale, params["wk"].T, params["wv"].T], axis=1)  # (E, 3E)
    return {
        "w_qkv_t": w_qkv_t.astype(jnp.bfloat16),
        "wu_t": params["wu"].T.astype(jnp.bfloat16),
        "bu": params["bu"].astype(jnp.float32),
    }


def self_attention_forward(x, prepared, heads):
    b, t, e = x.shape
    q, k, v = fused_qkv_projection(x.reshape(b * t, e), prepared["w_qkv_t"])
    # Free reshapes (no transposes, no HBM round-trip reorders).
    q = q.reshape(b, t, e)
    k = k.reshape(b, t, e)
    v = v.reshape(b, t, e)
    return attention_unify(q, k, v, prepared["wu_t"], prepared["bu"], heads)


# Pure-JAX reference (mirrors the PyTorch forward exactly, f32) for verification.
def self_attention_ref(x, params, heads):
    b, t, e = x.shape
    h = heads
    s = e // h
    keys = x @ params["wk"].T
    queries = x @ params["wq"].T
    values = x @ params["wv"].T

    def to_heads(y):
        return y.reshape(b, t, h, s).transpose(0, 2, 1, 3).reshape(b * h, t, s)

    k, q, v = to_heads(keys), to_heads(queries), to_heads(values)
    q = q / e ** 0.25
    k = k / e ** 0.25
    dot = jnp.einsum("bts,bus->btu", q, k)
    dot = jax.nn.softmax(dot, axis=2)
    out = jnp.einsum("btu,bus->bts", dot, v)
    out = out.reshape(b, h, t, s).transpose(0, 2, 1, 3).reshape(b, t, e)
    return out @ params["wu"].T + params["bu"]


# --------------------------------- driver ----------------------------------- #

def init_params(key, embedding):
    # nn.Linear default init: U(-1/sqrt(fan_in), 1/sqrt(fan_in)).
    bound = 1.0 / math.sqrt(embedding)
    ks = jax.random.split(key, 5)
    u = lambda k, shape: jax.random.uniform(k, shape, jnp.float32, -bound, bound)
    return {
        "wk": u(ks[0], (embedding, embedding)),
        "wq": u(ks[1], (embedding, embedding)),
        "wv": u(ks[2], (embedding, embedding)),
        "wu": u(ks[3], (embedding, embedding)),
        "bu": u(ks[4], (1, embedding)),
    }


if __name__ == "__main__":
    B, T, E, H = 2, 8, 32, 8
    key = jax.random.PRNGKey(0)
    kx, kp = jax.random.split(key)
    x = jax.random.normal(kx, (B, T, E), jnp.float32)
    params = init_params(kp, E)
    prepared = prepare_params(params)

    out = self_attention_forward(x, prepared, H)
    out = jax.block_until_ready(out)

    ref = self_attention_ref(x, params, H)
    assert out.shape == (B, T, E)
    # bf16 MXU operands + approx softmax reciprocal -> loosened tolerance.
    assert jnp.allclose(out, ref, atol=2e-2, rtol=2e-2), "mismatch vs reference"

    print("KERNEL_OK")
</pallas_src>

<mosaic_0001>
module attributes {stable_mosaic.version = 11 : i64} {
  func.func @qkv_proj_kernel(%arg0: i32, %arg1: memref<16x32xf32, #tpu.memory_space<vmem>>, %arg2: memref<32x96xbf16, #tpu.memory_space<vmem>>, %arg3: memref<16x32xbf16, #tpu.memory_space<vmem>>, %arg4: memref<16x32xbf16, #tpu.memory_space<vmem>>, %arg5: memref<16x32xbf16, #tpu.memory_space<vmem>>) attributes {dimension_semantics = [#tpu.dimension_semantics<parallel>], iteration_bounds = array<i64: 1>, scalar_prefetch = 0 : i64, scratch_operands = 0 : i64, tpu.core_type = #tpu.core_type<tc>, window_params = [{transform_indices = @transform_0, window_bounds = array<i64: 16, 32>}, {pipeline_mode = #tpu.pipeline_mode<synchronous>, transform_indices = @transform_1, window_bounds = array<i64: 32, 96>}, {transform_indices = @transform_2, window_bounds = array<i64: 16, 32>}, {transform_indices = @transform_3, window_bounds = array<i64: 16, 32>}, {transform_indices = @transform_4, window_bounds = array<i64: 16, 32>}]} {
    %c0 = arith.constant 0 : index
    %c0_0 = arith.constant 0 : index
    %0 = vector.load %arg1[%c0, %c0_0] : memref<16x32xf32, #tpu.memory_space<vmem>>, vector<16x32xf32>
    %1 = arith.truncf %0 : vector<16x32xf32> to vector<16x32xbf16>
    %c0_1 = arith.constant 0 : index
    %c0_2 = arith.constant 0 : index
    %2 = vector.load %arg2[%c0_1, %c0_2] : memref<32x96xbf16, #tpu.memory_space<vmem>>, vector<32x96xbf16>
    %cst = arith.constant dense<0.000000e+00> : vector<16x96xf32>
    %3 = tpu.matmul %1, %2, %cst {dimension_numbers = #tpu.dot_dimension_numbers<[1], [0], [0], [1], [0, 0, 1, 1], [], []>} : vector<16x32xbf16>, vector<32x96xbf16>, vector<16x96xf32> -> vector<16x96xf32>
    %4 = vector.extract_strided_slice %3 {offsets = [0, 0], sizes = [16, 32], strides = [1, 1]} : vector<16x96xf32> to vector<16x32xf32>
    %5 = arith.truncf %4 : vector<16x32xf32> to vector<16x32xbf16>
    %c0_3 = arith.constant 0 : index
    %c0_4 = arith.constant 0 : index
    %6 = vector.load %arg3[%c0_3, %c0_4] : memref<16x32xbf16, #tpu.memory_space<vmem>>, vector<16x32xbf16>
    tpu.vector_store %arg3[%c0_3, %c0_4], %5 {strides = array<i32>} : memref<16x32xbf16, #tpu.memory_space<vmem>>, vector<16x32xbf16>,
    %7 = vector.extract_strided_slice %3 {offsets = [0, 32], sizes = [16, 32], strides = [1, 1]} : vector<16x96xf32> to vector<16x32xf32>
    %8 = arith.truncf %7 : vector<16x32xf32> to vector<16x32xbf16>
    %c0_5 = arith.constant 0 : index
    %c0_6 = arith.constant 0 : index
    %9 = vector.load %arg4[%c0_5, %c0_6] : memref<16x32xbf16, #tpu.memory_space<vmem>>, vector<16x32xbf16>
    tpu.vector_store %arg4[%c0_5, %c0_6], %8 {strides = array<i32>} : memref<16x32xbf16, #tpu.memory_space<vmem>>, vector<16x32xbf16>,
    %10 = vector.extract_strided_slice %3 {offsets = [0, 64], sizes = [16, 32], strides = [1, 1]} : vector<16x96xf32> to vector<16x32xf32>
    %11 = arith.truncf %10 : vector<16x32xf32> to vector<16x32xbf16>
    %c0_7 = arith.constant 0 : index
    %c0_8 = arith.constant 0 : index
    %12 = vector.load %arg5[%c0_7, %c0_8] : memref<16x32xbf16, #tpu.memory_space<vmem>>, vector<16x32xbf16>
    tpu.vector_store %arg5[%c0_7, %c0_8], %11 {strides = array<i32>} : memref<16x32xbf16, #tpu.memory_space<vmem>>, vector<16x32xbf16>,
    return
  }
  func.func @transform_0(%arg0: i32) -> (i32, i32) {
    %c0_i32 = arith.constant 0 : i32
    %c0_i32_0 = arith.constant 0 : i32
    return %arg0, %c0_i32 : i32, i32
  }
  func.func @transform_1(%arg0: i32) -> (i32, i32) {
    %c0_i32 = arith.constant 0 : i32
    %c0_i32_0 = arith.constant 0 : i32
    %c0_i32_1 = arith.constant 0 : i32
    return %c0_i32, %c0_i32_0 : i32, i32
  }
  func.func @transform_2(%arg0: i32) -> (i32, i32) {
    %c0_i32 = arith.constant 0 : i32
    %c0_i32_0 = arith.constant 0 : i32
    return %arg0, %c0_i32 : i32, i32
  }
  func.func @transform_3(%arg0: i32) -> (i32, i32) {
    %c0_i32 = arith.constant 0 : i32
    %c0_i32_0 = arith.constant 0 : i32
    return %arg0, %c0_i32 : i32, i32
  }
  func.func @transform_4(%arg0: i32) -> (i32, i32) {
    %c0_i32 = arith.constant 0 : i32
    %c0_i32_0 = arith.constant 0 : i32
    return %arg0, %c0_i32 : i32, i32
  }
}

</mosaic_0001>

<llo_original>
// kernel: tpu_custom_call.1
$region0: #{tpu_custom_call.1}
  #allocation0 [shape = 'u32[]', space=smem, size = 0x4, offset = 0x4, fixed_abs, tag = 'smem constant byte address 0x4 - core index']
  #allocation1 [shape = 'u32[72,128]{1,0:T(1,128)}', space=vmem, size = 0x9000, scoped, tag = 'internal scratch']
  %s0 = inlined_call_operand.hbm [shape: f32[16,32], index: 0, kind: input, shape index: {}]
  %s1 = inlined_call_operand.hbm [shape: bf16[32,96], index: 1, kind: input, shape index: {}]
  %s2 = inlined_call_operand.hbm [shape: bf16[16,32], index: 2, kind: output, shape index: {0}]
  %s3 = inlined_call_operand.hbm [shape: bf16[16,32], index: 3, kind: output, shape index: {1}]
  %s4 = inlined_call_operand.hbm [shape: bf16[16,32], index: 4, kind: output, shape index: {2}]
  %5 = xla_tuple %s2, %s3, %s4
  %s6 = sld [smem:[#allocation0]]
  $region42: #{tpu_custom_call.1} parent=0
    _
  %s8 = ssub.s32 1, %s6
  %s9 = scalar_select 0, %s8, %s6
  $region1: #{tpu_custom_call.1} parent=0
    #allocation2 [shape = 'u8[8192]{0}', space=vmem, size = 0x2000, scoped, tag = 'input window, operand 0, single buffered']
    #allocation3 [shape = 's32[1]{0}', space=sflag, size = 0x4, scoped, tag = 'scoped memory for tpu_custom_call.1']
    #allocation4 [shape = 's32[1]{0}', space=sflag, size = 0x4, scoped, tag = 'scoped memory for tpu_custom_call.1']
    #allocation5 [shape = 'u8[8192]{0}', space=vmem, size = 0x2000, scoped, tag = 'input window, operand 1, single buffered']
    #allocation6 [shape = 's32[1]{0}', space=sflag, size = 0x4, scoped, tag = 'scoped memory for tpu_custom_call.1']
    #allocation7 [shape = 'u8[4096]{0}', space=vmem, size = 0x1000, scoped, tag = 'output window, operand 0, single buffered']
    #allocation8 [shape = 'u8[4096]{0}', space=vmem, size = 0x1000, scoped, tag = 'output window, operand 1, single buffered']
    #allocation9 [shape = 's32[1]{0}', space=sflag, size = 0x4, scoped, tag = 'scoped memory for tpu_custom_call.1']
    #allocation10 [shape = 'u8[4096]{0}', space=vmem, size = 0x1000, scoped, tag = 'output window, operand 2, single buffered']
    %10 = vsyncpa [#allocation3], 0
    %11 = vsyncpa [#allocation6], 0
    %12 = vsyncpa [#allocation4], 0
    %13 = vsyncpa [#allocation9], 0
    // Predicated region
    $region2: #{tpu_custom_call.1} parent=1 // pred_check
      _
    $region3: #{tpu_custom_call.1} parent=1 // pred_check_branch
      %15 = sbr.rel (0) target = $region5
    $region4: #{tpu_custom_call.1} parent=1 // pred_region
      %17 = vsyncadd [#allocation3], 0
      %s18 = sshll.u32 %s0, 4
      %s19 = int_to_ptr.hbm [resolvable:$true] %s18
      %s20 = sshll.u32 [#allocation2], 4
      %s21 = int_to_ptr.vmem [resolvable:$true] %s20
      %26 = dma.hbm_to_vmem [thread:$0]  %s19, 256, %s21, [#allocation3], 128, 128, 8
    $region5: #{tpu_custom_call.1} parent=1 // pred_fallthru
      _
    // Predicated region
    $region6: #{tpu_custom_call.1} parent=1 // pred_check
      _
    $region7: #{tpu_custom_call.1} parent=1 // pred_check_branch
      %28 = sbr.rel (0) target = $region9
    $region8: #{tpu_custom_call.1} parent=1 // pred_region
      %30 = vsyncadd [#allocation6], 0
      %s31 = sshll.u32 %s1, 4
      %s32 = int_to_ptr.hbm [resolvable:$true] %s31
      %s33 = sshll.u32 [#allocation5], 4
      %s34 = int_to_ptr.vmem [resolvable:$true] %s33
      %39 = dma.hbm_to_vmem [thread:$0]  %s32, 256, %s34, [#allocation6], 64, 64, 4
    $region9: #{tpu_custom_call.1} parent=1 // pred_fallthru
      _
    // Predicated region
    $region10: #{tpu_custom_call.1} parent=1 // pred_check
      _
    $region11: #{tpu_custom_call.1} parent=1 // pred_check_branch
      %41 = sbr.rel (0) target = $region13
    $region12: #{tpu_custom_call.1} parent=1 // pred_region
      %43 = dma.done [#allocation3], 256
    $region13: #{tpu_custom_call.1} parent=1 // pred_fallthru
      _
    // Predicated region
    $region14: #{tpu_custom_call.1} parent=1 // pred_check
      _
    $region15: #{tpu_custom_call.1} parent=1 // pred_check_branch
      %45 = sbr.rel (0) target = $region17
    $region16: #{tpu_custom_call.1} parent=1 // pred_region
      %47 = dma.done [#allocation6], 256
    $region17: #{tpu_custom_call.1} parent=1 // pred_fallthru
      _
    %v49 = vld [vmem:[#allocation2] sm:$0xff]
    %v50 = vld [vmem:[#allocation2 + $0x8] sm:$0xff]
    %v51 = vpack.c.bf16 %v50, %v49
    %v52 = vld [vmem:[#allocation5] sm:$0xf]
    %v53 = vld [vmem:[#allocation5 + $0x4] sm:$0xf]
    %v54 = vld [vmem:[#allocation5 + $0x8] sm:$0xf]
    %v55 = vld [vmem:[#allocation5 + $0xc] sm:$0xf]
    %v60 = vunpack.c.l.b16 %v52
    %v61 = vunpack.c.l.b16 %v53
    %v62 = vunpack.c.l.b16 %v54
    %v63 = vunpack.c.l.b16 %v55
    %v64 = vpack.c.b16 %v61, %v60
    %v65 = vpack.c.b16 %v63, %v62
    %vm68 = vcmask 261120
    %v70 = vsel %vm68, %v51, 0
    %72 = vmatpush.bf16.msra.mxu0 0
    %73 = vmatpush.bf16.msra.mxu0 0
    %74 = vmatpush.bf16.msra.mxu0 0
    %75 = vmatpush.bf16.msra.mxu0 0
    %76 = vmatpush.bf16.msra.mxu0 0
    %77 = vmatpush.bf16.msra.mxu0 0
    %78 = vmatpush.bf16.msra.mxu0 %v65
    %79 = vmatpush.bf16.msra.mxu0 %v64
    %80 = vmatmul.bf16.gmra.mxu0 %v70
    %v81 = vpop.f32.mrf.mxu0
    %v82 = vadd.f32 0.0, %v81
    %v83 = vpop.f32.mrf.mxu0
    %v84 = vadd.f32 0.0, %v83
    %85 = vdwg.mxu0
    %v86 = vpack.c.bf16 %v82, %v82
    %v87 = vpack.c.bf16 %v84, %v84
    %vm88 = vcmask 257024
    %89 = vst.msk [vmem:[#allocation7] sm:$0xf] %vm88, %v86
    %90 = vst.msk [vmem:[#allocation7 + $0x4] sm:$0xf] %vm88, %v87
    %93 = vrot.lane.b32.xlu0 %v86, 96
    %v94 = vpop.permute.xlu0 %93
    %95 = vrot.lane.b32.xlu0 %v87, 96
    %v96 = vpop.permute.xlu0 %95
    %99 = vst.msk [vmem:[#allocation8] sm:$0xf] %vm88, %v94
    %100 = vst.msk [vmem:[#allocation8 + $0x4] sm:$0xf] %vm88, %v96
    %101 = vrot.lane.b32.xlu0 %v86, 64
    %v102 = vpop.permute.xlu0 %101
    %103 = vrot.lane.b32.xlu0 %v87, 64
    %v104 = vpop.permute.xlu0 %103
    %107 = vst.msk [vmem:[#allocation10] sm:$0xf] %vm88, %v102
    %108 = vst.msk [vmem:[#allocation10 + $0x4] sm:$0xf] %vm88, %v104
    // Predicated region
    $region18: #{tpu_custom_call.1} parent=1 // pred_check
      _
    $region19: #{tpu_custom_call.1} parent=1 // pred_check_branch
      %110 = sbr.rel (0) target = $region21
    $region20: #{tpu_custom_call.1} parent=1 // pred_region
      %112 = vsyncadd [#allocation4], 0
      %s113 = sshll.u32 [#allocation7], 4
      %s114 = int_to_ptr.vmem [resolvable:$true] %s113
      %s115 = sshll.u32 %s2, 4
      %s116 = int_to_ptr.hbm [resolvable:$true] %s115
      %121 = dma.vmem_to_hbm [thread:$0]  %s114, 128, %s116, [#allocation4], 64, 64, 4
    $region21: #{tpu_custom_call.1} parent=1 // pred_fallthru
      _
    // Predicated region
    $region22: #{tpu_custom_call.1} parent=1 // pred_check
      _
    $region23: #{tpu_custom_call.1} parent=1 // pred_check_branch
      %123 = sbr.rel (0) target = $region25
    $region24: #{tpu_custom_call.1} parent=1 // pred_region
      %125 = vsyncadd [#allocation9], 0
      %s126 = sshll.u32 [#allocation8], 4
      %s127 = int_to_ptr.vmem [resolvable:$true] %s126
      %s128 = sshll.u32 %s3, 4
      %s129 = int_to_ptr.hbm [resolvable:$true] %s128
      %134 = dma.vmem_to_hbm [thread:$0]  %s127, 128, %s129, [#allocation9], 64, 64, 4
    $region25: #{tpu_custom_call.1} parent=1 // pred_fallthru
      _
    // Predicated region
    $region26: #{tpu_custom_call.1} parent=1 // pred_check
      _
    $region27: #{tpu_custom_call.1} parent=1 // pred_check_branch
      %136 = sbr.rel (0) target = $region29
    $region28: #{tpu_custom_call.1} parent=1 // pred_region
      %138 = vsyncadd [#allocation9], 0
      %s139 = sshll.u32 [#allocation10], 4
      %s140 = int_to_ptr.vmem [resolvable:$true] %s139
      %s141 = sshll.u32 %s4, 4
      %s142 = int_to_ptr.hbm [resolvable:$true] %s141
      %147 = dma.vmem_to_hbm [thread:$0]  %s140, 128, %s142, [#allocation9], 64, 64, 4
    $region29: #{tpu_custom_call.1} parent=1 // pred_fallthru
      _
    // Predicated region
    $region30: #{tpu_custom_call.1} parent=1 // pred_check
      _
    $region31: #{tpu_custom_call.1} parent=1 // pred_check_branch
      %149 = sbr.rel (0) target = $region33
    $region32: #{tpu_custom_call.1} parent=1 // pred_region
      %151 = dma.done [#allocation4], 128
    $region33: #{tpu_custom_call.1} parent=1 // pred_fallthru
      _
    // Predicated region
    $region34: #{tpu_custom_call.1} parent=1 // pred_check
      _
    $region35: #{tpu_custom_call.1} parent=1 // pred_check_branch
      %153 = sbr.rel (0) target = $region37
    $region36: #{tpu_custom_call.1} parent=1 // pred_region
      %155 = dma.done [#allocation9], 128
    $region37: #{tpu_custom_call.1} parent=1 // pred_fallthru
      _
    // Predicated region
    $region38: #{tpu_custom_call.1} parent=1 // pred_check
      _
    $region39: #{tpu_custom_call.1} parent=1 // pred_check_branch
      %157 = sbr.rel (0) target = $region41
    $region40: #{tpu_custom_call.1} parent=1 // pred_region
      %159 = dma.done [#allocation9], 128
    $region41: #{tpu_custom_call.1} parent=1 // pred_fallthru
      _
    %160 = vsyncpa [#allocation3], 1
    %161 = vsyncpa [#allocation6], 1
    %162 = vsyncpa [#allocation4], 1
    %163 = vsyncpa [#allocation9], 1

</llo_original>
